<compile_context>
chip_gen: v5e
topology: v5e:2x2
jax: 0.10.0
libtpu: 0.0.40
codegen_flags: <defaults>
</compile_context>

<pallas_src>
import functools

import jax
import jax.numpy as jnp
from jax.experimental import pallas as pl
from jax.experimental.pallas import tpu as pltpu


def _avg_pool_kernel(x_ref, o_ref, acc_ref, *, inv_s, tile_s, valid_last, ragged):
    """Accumulate a partial sequence-sum for one batch row.

    x_ref:   (1, tS, D) input tile
    o_ref:   (1, 1, D)  output tile (written only on the last seq step)
    acc_ref: (1, 1, D)  f32 accumulator, resident across the seq grid axis
    """
    s = pl.program_id(1)
    n_s = pl.num_programs(1)

    @pl.when(s == 0)
    def _init():
        acc_ref[...] = jnp.zeros_like(acc_ref)

    x = x_ref[...]  # (1, tS, D)
    if ragged:
        # The last sequence tile is partial: rows past the true sequence length
        # hold unspecified (stale) VMEM data and must be zeroed before summing.
        row = jax.lax.broadcasted_iota(jnp.int32, x.shape, 1)
        valid = jnp.where(s == n_s - 1, valid_last, tile_s)
        x = jnp.where(row < valid, x, jnp.zeros_like(x))

    # Accumulate in f32 without materializing a full f32 copy of the tile.
    acc_ref[...] += jnp.sum(x, axis=1, keepdims=True, dtype=jnp.float32)

    @pl.when(s == n_s - 1)
    def _finalize():
        o_ref[...] = (acc_ref[...] * inv_s).astype(o_ref.dtype)


def _round_up(x, m):
    return -(-x // m) * m


def avg_pooler(hidden_states, hidden_size, *, vmem_budget_bytes=4 * 1024 * 1024):
    """Pallas implementation of AvgPooler.forward.

    hidden_states: (B, S, D) with D == hidden_size.
    returns: (B, hidden_size)  (== .view(-1, hidden_size) of the pooled output)
    """
    B, S, D = hidden_states.shape
    assert D == hidden_size, "adaptive width pooling is identity only if W == hidden_size"

    itemsize = jnp.dtype(hidden_states.dtype).itemsize
    # dtype-native sublane multiple: 8 (f32), 16 (bf16), 32 (int8/fp8)
    sub = max(8, 32 // itemsize)

    # Sequence-tile rows from the per-buffer VMEM byte budget (no artificial cap).
    rows = vmem_budget_bytes // max(1, D * itemsize)
    rows = max(sub, (rows // sub) * sub)

    if S <= rows:
        # Single tile covering the whole sequence (block dim == full array dim).
        t_s = S
        n_s = 1
        valid_last = S
        ragged = False
    else:
        # Balanced tiles: multiple of the sublane width, within the byte budget,
        # so the ragged remainder (masked in-kernel) is as small as possible.
        n_chunks = pl.cdiv(S, rows)
        t_s = _round_up(pl.cdiv(S, n_chunks), sub)
        n_s = pl.cdiv(S, t_s)
        valid_last = S - (n_s - 1) * t_s
        ragged = valid_last != t_s

    kernel = functools.partial(
        _avg_pool_kernel,
        inv_s=1.0 / S,
        tile_s=t_s,
        valid_last=valid_last,
        ragged=ragged,
    )

    out = pl.pallas_call(
        kernel,
        out_shape=jax.ShapeDtypeStruct((B, 1, D), hidden_states.dtype),
        grid_spec=pltpu.PrefetchScalarGridSpec(
            num_scalar_prefetch=0,
            grid=(B, n_s),
            in_specs=[pl.BlockSpec((1, t_s, D), lambda b, s: (b, s, 0))],
            out_specs=pl.BlockSpec((1, 1, D), lambda b, s: (b, 0, 0)),
            scratch_shapes=[pltpu.VMEM((1, 1, D), jnp.float32)],
        ),
        compiler_params=pltpu.CompilerParams(
            dimension_semantics=("parallel", "arbitrary"),
        ),
    )(hidden_states)

    # equivalent of .view(-1, hidden_size)
    return out.reshape(-1, hidden_size)


if __name__ == "__main__":
    key = jax.random.PRNGKey(0)

    # --- primary check: small shapes implied by the module (B=2, S=8, D=32) ---
    B, S, hidden_size = 2, 8, 32
    hidden_states = jax.random.normal(key, (B, S, hidden_size), dtype=jnp.float32)
    result = avg_pooler(hidden_states, hidden_size)
    jax.block_until_ready(result)
    ref = jnp.mean(hidden_states, axis=1).reshape(-1, hidden_size)
    assert result.shape == (B, hidden_size)
    assert jnp.allclose(result, ref, atol=1e-6, rtol=1e-6), "mismatch vs reference (small)"

    # --- exercise the tiled + ragged (masked last tile) path, no wrapper pad ---
    k2 = jax.random.PRNGKey(1)
    B2, S2, D2 = 2, 300, 128
    x2 = jax.random.normal(k2, (B2, S2, D2), dtype=jnp.float32)
    r2 = avg_pooler(x2, D2, vmem_budget_bytes=64 * 1024)  # small budget -> several S tiles
    jax.block_until_ready(r2)
    ref2 = jnp.mean(x2, axis=1)
    assert jnp.allclose(r2, ref2, atol=1e-5, rtol=1e-5), "mismatch vs reference (tiled/ragged)"

    # --- exercise bf16 (16-row sublane rounding) with a ragged last tile ---
    k3 = jax.random.PRNGKey(2)
    x3 = jax.random.normal(k3, (1, 50, 64), dtype=jnp.float32).astype(jnp.bfloat16)
    r3 = avg_pooler(x3, 64, vmem_budget_bytes=2048)
    jax.block_until_ready(r3)
    ref3 = jnp.mean(x3.astype(jnp.float32), axis=1)
    assert jnp.allclose(r3.astype(jnp.float32), ref3, atol=2e-2, rtol=2e-2), \
        "mismatch vs reference (bf16 ragged)"

    print("KERNEL_OK")
</pallas_src>

<mosaic_0001>
module attributes {stable_mosaic.version = 11 : i64} {
  func.func @_avg_pool_kernel(%arg0: i32, %arg1: i32, %arg2: memref<1x8x32xf32, #tpu.memory_space<vmem>>, %arg3: memref<1x1x32xf32, #tpu.memory_space<vmem>>, %arg4: memref<1x1x32xf32, #tpu.memory_space<vmem>>) attributes {dimension_semantics = [#tpu.dimension_semantics<parallel>, #tpu.dimension_semantics<arbitrary>], iteration_bounds = array<i64: 2, 1>, scalar_prefetch = 0 : i64, scratch_operands = 1 : i64, tpu.core_type = #tpu.core_type<tc>, window_params = [{transform_indices = @transform_0, window_bounds = array<i64: 1, 8, 32>}, {transform_indices = @transform_1, window_bounds = array<i64: 1, 1, 32>}]} {
    %c0_i32 = arith.constant 0 : i32
    %0 = arith.cmpi eq, %arg1, %c0_i32 : i32
    %1 = arith.extui %0 : i1 to i32
    %c0_i32_0 = arith.constant 0 : i32
    %2 = arith.cmpi ne, %1, %c0_i32_0 : i32
    scf.if %2 {
      %cst_11 = arith.constant 0.000000e+00 : f32
      %12 = vector.broadcast %cst_11 : f32 to vector<1x1x32xf32>
      %c0_12 = arith.constant 0 : index
      %c0_13 = arith.constant 0 : index
      %c0_14 = arith.constant 0 : index
      %13 = vector.load %arg4[%c0_12, %c0_13, %c0_14] : memref<1x1x32xf32, #tpu.memory_space<vmem>>, vector<1x1x32xf32>
      tpu.vector_store %arg4[%c0_12, %c0_13, %c0_14], %12 {strides = array<i32>} : memref<1x1x32xf32, #tpu.memory_space<vmem>>, vector<1x1x32xf32>,
    } else {
    }
    %c0 = arith.constant 0 : index
    %c0_1 = arith.constant 0 : index
    %c0_2 = arith.constant 0 : index
    %3 = vector.load %arg2[%c0, %c0_1, %c0_2] : memref<1x8x32xf32, #tpu.memory_space<vmem>>, vector<1x8x32xf32>
    %c0_3 = arith.constant 0 : index
    %c0_4 = arith.constant 0 : index
    %c0_5 = arith.constant 0 : index
    %4 = vector.load %arg4[%c0_3, %c0_4, %c0_5] : memref<1x1x32xf32, #tpu.memory_space<vmem>>, vector<1x1x32xf32>
    %cst = arith.constant dense<0.000000e+00> : vector<1x32xf32>
    %5 = vector.multi_reduction <add>, %3, %cst [1] : vector<1x8x32xf32> to vector<1x32xf32>
    %6 = vector.shape_cast %5 : vector<1x32xf32> to vector<1x1x32xf32>
    %7 = arith.addf %4, %6 : vector<1x1x32xf32>
    %c0_6 = arith.constant 0 : index
    %c0_7 = arith.constant 0 : index
    %c0_8 = arith.constant 0 : index
    %8 = vector.load %arg4[%c0_6, %c0_7, %c0_8] : memref<1x1x32xf32, #tpu.memory_space<vmem>>, vector<1x1x32xf32>
    tpu.vector_store %arg4[%c0_6, %c0_7, %c0_8], %7 {strides = array<i32>} : memref<1x1x32xf32, #tpu.memory_space<vmem>>, vector<1x1x32xf32>,
    %c0_i32_9 = arith.constant 0 : i32
    %9 = arith.cmpi eq, %arg1, %c0_i32_9 : i32
    %10 = arith.extui %9 : i1 to i32
    %c0_i32_10 = arith.constant 0 : i32
    %11 = arith.cmpi ne, %10, %c0_i32_10 : i32
    scf.if %11 {
      %c0_11 = arith.constant 0 : index
      %c0_12 = arith.constant 0 : index
      %c0_13 = arith.constant 0 : index
      %12 = vector.load %arg4[%c0_11, %c0_12, %c0_13] : memref<1x1x32xf32, #tpu.memory_space<vmem>>, vector<1x1x32xf32>
      %cst_14 = arith.constant 1.250000e-01 : f32
      %13 = vector.broadcast %cst_14 : f32 to vector<1x1x32xf32>
      %14 = arith.mulf %12, %13 : vector<1x1x32xf32>
      %c0_15 = arith.constant 0 : index
      %c0_16 = arith.constant 0 : index
      %c0_17 = arith.constant 0 : index
      %15 = vector.load %arg3[%c0_15, %c0_16, %c0_17] : memref<1x1x32xf32, #tpu.memory_space<vmem>>, vector<1x1x32xf32>
      tpu.vector_store %arg3[%c0_15, %c0_16, %c0_17], %14 {strides = array<i32>} : memref<1x1x32xf32, #tpu.memory_space<vmem>>, vector<1x1x32xf32>,
    } else {
    }
    return
  }
  func.func @transform_0(%arg0: i32, %arg1: i32) -> (i32, i32, i32) {
    %c0_i32 = arith.constant 0 : i32
    %c0_i32_0 = arith.constant 0 : i32
    return %arg0, %arg1, %c0_i32 : i32, i32, i32
  }
  func.func @transform_1(%arg0: i32, %arg1: i32) -> (i32, i32, i32) {
    %c0_i32 = arith.constant 0 : i32
    %c0_i32_0 = arith.constant 0 : i32
    %c0_i32_1 = arith.constant 0 : i32
    return %arg0, %c0_i32, %c0_i32_0 : i32, i32, i32
  }
}

</mosaic_0001>

<llo_original>
// kernel: tpu_custom_call.1
$region0: #{tpu_custom_call.1}
  #allocation0 [shape = 'u32[]', space=smem, size = 0x4, offset = 0x4, fixed_abs, tag = 'smem constant byte address 0x4 - core index']
  #allocation1 [shape = 'u32[72,128]{1,0:T(1,128)}', space=vmem, size = 0x9000, scoped, tag = 'internal scratch']
  #allocation2 [shape = 'f32[1,1,32]{2,1,0:T(1,128)}', space=vmem, size = 0x200, scoped, tag = 'scratch operand']
  %s0 = inlined_call_operand.hbm [shape: f32[2,8,32], index: 0, kind: input, shape index: {}]
  %s1 = inlined_call_operand.hbm [shape: f32[2,1,32], index: 1, kind: output, shape index: {}]
  %s2 = sld [smem:[#allocation0]]
  $region49: #{tpu_custom_call.1} parent=0
    _
  %s4 = ssub.s32 1, %s2
  %s5 = scalar_select 0, %s4, %s2
  $region1: #{tpu_custom_call.1} parent=0
    #allocation3 [shape = 'u8[8192]{0}', space=vmem, size = 0x2000, scoped, tag = 'input window, operand 0']
    #allocation4 [shape = 's32[2]{0}', space=sflag, size = 0x8, scoped, tag = 'scoped memory for tpu_custom_call.1']
    #allocation5 [shape = 's32[2]{0}', space=sflag, size = 0x8, scoped, tag = 'scoped memory for tpu_custom_call.1']
    #allocation6 [shape = 'u8[1024]{0}', space=vmem, size = 0x400, scoped, tag = 'output window, operand 0']
    %6 = vsyncpa [#allocation4], 0
    %s7 = scalar_lea.sflag [#allocation4], 1
    %8 = vsyncpa %s7, 0
    %9 = vsyncpa [#allocation5], 0
    %s10 = scalar_lea.sflag [#allocation5], 1
    %11 = vsyncpa %s10, 0
    loop: start=0, step=1, limit=4
    $region2: #{tpu_custom_call.1} parent=1 // loop_pre_header
      _
    $region3: #{tpu_custom_call.1} parent=1 // loop_header
      %s13 = sphi 0, %s17
      %p14 = scmp.ge.s32.totalorder %s13, 4
      %s20 = sphi 0, %s32
      %s21 = sphi 0, %s28
      %s22 = sphi 0, %s20
      %s23 = sphi 0, %s21
      %s24 = sphi 0, %s22
      %s25 = sphi 0, %s23
      %s37 = sphi 0, %s39
      %s40 = sphi 0, %s37
      %s41 = sphi 0, %s40
      %s57 = sphi 0, %s41
      %s63 = sphi 0, %s65
      %s66 = sphi 0, %s63
      %s67 = sphi 0, %s66
      %s83 = sphi 0, %s67
    $region4: #{tpu_custom_call.1} parent=1 // loop_header_branch
      %16 = sbr.rel (%p14) target = $region8
    $region5: #{tpu_custom_call.1} parent=1 // loop_body
      %s18 = ssub.s32 %s13, 1
      %s19 = ssub.s32 %s13, 2
      %s26 = sadd.s32 1, %s21
      %p27 = scmp.ge.s32.totalorder %s26, 1
      %s28 = scalar_select %p27, 0, %s26
      %s29 = sadd.s32 1, %s20
      %s30 = scalar_select %p27, %s29, %s20
      %p31 = scmp.ge.s32.totalorder %s30, 2
      %s32 = scalar_select %p31, 0, %s30
      %s33 = ssub.s32 %s20, %s32
      %s34 = ssub.s32 %s21, %s28
      %s35 = sor.u32 %s33, %s34
      %p36 = scmp.eq.s32.totalorder %s35, 0
      %s38 = sadd.s32 %s37, 1
      %s39 = scalar_select %p36, %s37, %s38
      %p42 = pneg %p36
      %p43 = scmp.eq.s32.totalorder %s13, 1
      %p44 = por %p42, %p43
      %p45 = scmp.ne.s32.totalorder %s37, %s40
      %p46 = scmp.eq.s32.totalorder %s13, 0
      %p47 = por %p45, %p46
      %p48 = scmp.ne.s32.totalorder %s37, %s40
      %p49 = scmp.eq.s32.totalorder %s18, 1
      %p50 = por %p48, %p49
      %p51 = scmp.ne.s32.totalorder %s40, %s41
      %p52 = scmp.eq.s32.totalorder %s18, 0
      %p53 = por %p51, %p52
      %p54 = scmp.ne.s32.totalorder %s40, %s41
      %p55 = scmp.eq.s32.totalorder %s19, 1
      %p56 = por %p54, %p55
      %p58 = scmp.ne.s32.totalorder %s41, %s57
      %p59 = scmp.eq.s32.totalorder %s19, 0
      %p60 = por %p58, %p59
      %s61 = ssub.s32 %s20, %s32
      %p62 = scmp.eq.s32.totalorder %s61, 0
      %s64 = sadd.s32 %s63, 1
      %s65 = scalar_select %p62, %s63, %s64
      %p68 = pneg %p62
      %p69 = scmp.eq.s32.totalorder %s13, 1
      %p70 = por %p68, %p69
      %p71 = scmp.ne.s32.totalorder %s63, %s66
      %p72 = scmp.eq.s32.totalorder %s13, 0
      %p73 = por %p71, %p72
      %p74 = scmp.ne.s32.totalorder %s63, %s66
      %p75 = scmp.eq.s32.totalorder %s18, 1
      %p76 = por %p74, %p75
      %p77 = scmp.ne.s32.totalorder %s66, %s67
      %p78 = scmp.eq.s32.totalorder %s18, 0
      %p79 = por %p77, %p78
      %p80 = scmp.ne.s32.totalorder %s66, %s67
      %p81 = scmp.eq.s32.totalorder %s19, 1
      %p82 = por %p80, %p81
      %p84 = scmp.ne.s32.totalorder %s67, %s83
      %p85 = scmp.eq.s32.totalorder %s19, 0
      %p86 = por %p84, %p85
      %p87 = scmp.le.s32.totalorder 1, %s13
      %p88 = scmp.lt.s32.totalorder %s13, 3
      %p89 = pnand %p87, %p88
      %p90 = pneg %p89
      // Predicated region
      $region9: #{tpu_custom_call.1} parent=5 // pred_check
        _
      $region10: #{tpu_custom_call.1} parent=5 // pred_check_branch
        %92 = sbr.rel (%p89) target = $region12
      $region11: #{tpu_custom_call.1} parent=5 // pred_region
        %s93 = ssub.s32 %s13, 1
      $region12: #{tpu_custom_call.1} parent=5 // pred_fallthru
        _
      %p94 = scmp.lt.s32.totalorder %s13, 2
      // Predicated region
      $region13: #{tpu_custom_call.1} parent=5 // pred_check
        %p95 = pneg %p94
      $region14: #{tpu_custom_call.1} parent=5 // pred_check_branch
        %97 = sbr.rel (%p95) target = $region16
      $region15: #{tpu_custom_call.1} parent=5 // pred_region
        // Predicated region
        $region17: #{tpu_custom_call.1} parent=15 // pred_check
          %p98 = pneg %p47
        $region18: #{tpu_custom_call.1} parent=15 // pred_check_branch
          %100 = sbr.rel (%p98) target = $region20
        $region19: #{tpu_custom_call.1} parent=15 // pred_region
          %s101 = sand.u32 %s37, 1
          %s102 = scalar_lea.sflag [#allocation4], %s101
          %s103 = sand.u32 %s37, 1
          %s104 = smul.addr %s103, 8
          %s105 = scalar_lea.vmem [#allocation3], %s104
          %107 = vsyncadd %s102, 0
          %s108 = sadd.s32 %s21, %s20
          %s109 = smul.addr %s108, 8
          %s110 = scalar_lea.hbm %s0, %s109
          %s112 = sshll.u32 %s110, 4
          %s113 = int_to_ptr.hbm [resolvable:$true] %s112
          %s114 = sshll.u32 %s105, 4
          %s115 = int_to_ptr.vmem [resolvable:$true] %s114
          %117 = dma.hbm_to_vmem [thread:$0]  %s113, 128, %s115, %s102
        $region20: #{tpu_custom_call.1} parent=15 // pred_fallthru
          _
      $region16: #{tpu_custom_call.1} parent=5 // pred_fallthru
        _
      %p118 = scmp.le.s32.totalorder 1, %s13
      %p119 = scmp.lt.s32.totalorder %s13, 3
      %p120 = pnand %p118, %p119
      %p121 = pneg %p120
      // Predicated region
      $region21: #{tpu_custom_call.1} parent=5 // pred_check
        _
      $region22: #{tpu_custom_call.1} parent=5 // pred_check_branch
        %123 = sbr.rel (%p120) target = $region24
      $region23: #{tpu_custom_call.1} parent=5 // pred_region
        %s124 = ssub.s32 %s13, 1
        %s125 = sand.u32 %s40, 1
        %s126 = scalar_lea.sflag [#allocation4], %s125
        %s127 = sand.u32 %s40, 1
        %s128 = smul.addr %s127, 8
        %s129 = scalar_lea.vmem [#allocation3], %s128
        // Predicated region
        $region25: #{tpu_custom_call.1} parent=23 // pred_check
          %p130 = pneg %p53
        $region26: #{tpu_custom_call.1} parent=23 // pred_check_branch
          %132 = sbr.rel (%p130) target = $region28
        $region27: #{tpu_custom_call.1} parent=23 // pred_region
          %134 = dma.done %s126, 128
        $region28: #{tpu_custom_call.1} parent=23 // pred_fallthru
          _
        %s135 = sand.u32 %s40, 1
        %s136 = scalar_lea.sflag [#allocation4], %s135
        %s137 = sand.u32 %s40, 1
        %s138 = smul.addr %s137, 8
        %s139 = scalar_lea.vmem [#allocation3], %s138
        %p140 = pneg %p53
        %p141 = pneg %p50
        %p142 = pneg %p79
        %p143 = pneg %p76
        %s144 = sand.u32 %s66, 1
        %s145 = scalar_lea.sflag [#allocation5], %s144
        %s146 = sand.u32 %s66, 1
        %s147 = scalar_lea.vmem [#allocation6], %s146
        %p148 = scmp.eq.s32.totalorder %s23, 0
        // Predicated region
        $region29: #{tpu_custom_call.1} parent=23 // pred_check
          %p149 = pneg %p148
        $region30: #{tpu_custom_call.1} parent=23 // pred_check_branch
          %151 = sbr.rel (%p149) target = $region32
        $region31: #{tpu_custom_call.1} parent=23 // pred_region
          %vm152 = vcmask 253952
          %153 = vst.msk [vmem:[#allocation2] sm:$0x1] %vm152, 0.0
        $region32: #{tpu_custom_call.1} parent=23 // pred_fallthru
          _
        %v154 = vld [vmem:[%s129] sm:$0xff]
        %v155 = vld [vmem:[#allocation2] sm:$0x1]
        %vm156 = vcmask 261120
        %v157 = vsel %vm156, %v154, 0.0
        %v158 = vrot.slane %v157, 4
        %v159 = vadd.f32 %v157, %v158
        %v160 = vrot.slane %v159, 2
        %v161 = vadd.f32 %v159, %v160
        %v162 = vrot.slane %v161, 1
        %v163 = vadd.f32 %v161, %v162
        %v164 = vadd.f32 %v155, %v163
        %vm165 = vcmask 253952
        %166 = vst.msk [vmem:[#allocation2] sm:$0x1] %vm165, %v164
        // Predicated region
        $region33: #{tpu_custom_call.1} parent=23 // pred_check
          %p167 = pneg %p148
        $region34: #{tpu_custom_call.1} parent=23 // pred_check_branch
          %169 = sbr.rel (%p167) target = $region36
        $region35: #{tpu_custom_call.1} parent=23 // pred_region
          %v170 = vld [vmem:[#allocation2] sm:$0x1]
          %v171 = vmul.f32 %v170, 0.125
          %172 = vst.msk [vmem:[%s147] sm:$0x1] %vm165, %v171
        $region36: #{tpu_custom_call.1} parent=23 // pred_fallthru
          _
        %s173 = sand.u32 %s66, 1
        %s174 = scalar_lea.sflag [#allocation5], %s173
        %s175 = sand.u32 %s66, 1
        %s176 = scalar_lea.vmem [#allocation6], %s175
        // Predicated region
        $region37: #{tpu_custom_call.1} parent=23 // pred_check
          %p177 = pneg %p76
        $region38: #{tpu_custom_call.1} parent=23 // pred_check_branch
          %179 = sbr.rel (%p177) target = $region40
        $region39: #{tpu_custom_call.1} parent=23 // pred_region
          %181 = vsyncadd %s174, 0
          %s182 = scalar_lea.hbm %s1, %s22
          %s184 = sshll.u32 %s176, 4
          %s185 = int_to_ptr.vmem [resolvable:$true] %s184
          %s186 = sshll.u32 %s182, 4
          %s187 = int_to_ptr.hbm [resolvable:$true] %s186
          %189 = dma.vmem_to_hbm [thread:$0]  %s185, 16, %s187, %s174
        $region40: #{tpu_custom_call.1} parent=23 // pred_fallthru
          _
      $region24: #{tpu_custom_call.1} parent=5 // pred_fallthru
        _
      %p190 = scmp.le.s32.totalorder 2, %s13
      // Predicated region
      $region41: #{tpu_custom_call.1} parent=5 // pred_check
        %p191 = pneg %p190
      $region42: #{tpu_custom_call.1} parent=5 // pred_check_branch
        %193 = sbr.rel (%p191) target = $region44
      $region43: #{tpu_custom_call.1} parent=5 // pred_region
        %s194 = ssub.s32 %s13, 2
        // Predicated region
        $region45: #{tpu_custom_call.1} parent=43 // pred_check
          %p195 = pneg %p82
        $region46: #{tpu_custom_call.1} parent=43 // pred_check_branch
          %197 = sbr.rel (%p195) target = $region48
        $region47: #{tpu_custom_call.1} parent=43 // pred_region
          %s198 = sand.u32 %s67, 1
          %s199 = scalar_lea.sflag [#allocation5], %s198
          %s200 = sand.u32 %s67, 1
          %s201 = scalar_lea.vmem [#allocation6], %s200
          %203 = dma.done %s199, 16
        $region48: #{tpu_custom_call.1} parent=43 // pred_fallthru
          _
      $region44: #{tpu_custom_call.1} parent=5 // pred_fallthru
        _
    $region6: #{tpu_custom_call.1} parent=1 // loop_footer
      %s17 = sadd.s32 1, %s13
    $region7: #{tpu_custom_call.1} parent=1 // loop_footer_branch
      %12 = sbr.rel target = $region3
    $region8: #{tpu_custom_call.1} parent=1 // loop_exit
      _
    %204 = vsyncpa [#allocation4], 1
    %s205 = scalar_lea.sflag [#allocation4], 1
    %206 = vsyncpa %s205, 1
    %207 = vsyncpa [#allocation5], 1
    %s208 = scalar_lea.sflag [#allocation5], 1
    %209 = vsyncpa %s208, 1

</llo_original>
